<compile_context>
chip_gen: v7x
topology: tpu7x:2x2x1
jax: 0.10.0
libtpu: 0.0.40
codegen_flags: <defaults>
</compile_context>

<pallas_src>
import jax
import jax.numpy as jnp
from jax.experimental import pallas as pl
from jax.experimental.pallas import tpu as pltpu


def _awca_kernel(wconv_ref, wfc_ref, x_ref, o_ref):
    x = x_ref[...]                                   # (Bt, C, HW) native dtype

    # ---- 1x1 conv (C -> 1): VPU multiply + sublane reduce over C (f32 acc) ----
    w3 = wconv_ref[...][:, :, None]                  # (1, C, 1) f32
    logits = jnp.sum(x * w3, axis=1, keepdims=True)  # (Bt, 1, HW) f32 (promoted)

    # ---- softmax over the spatial axis ----
    m = jnp.max(logits, axis=-1, keepdims=True)
    e = jnp.exp(logits - m)
    denom = jnp.sum(e, axis=-1, keepdims=True)       # (Bt, 1, 1)
    p = e * pl.reciprocal(denom, approx=True)        # (Bt, 1, HW) f32

    # ---- y[b,c] = sum_s x[b,c,s] * p[b,0,s]  (lane reduce, f32 acc) ----
    y = jnp.sum(x * p, axis=-1, keepdims=True)       # (Bt, C, 1) f32

    # ---- fc: Linear(C->1) -> LeakyReLU(0.2) -> Linear(1->C) -> Sigmoid ----
    wfc = wfc_ref[...]                               # (C, 2) f32
    w1 = wfc[:, 0:1][None, :, :]                     # (1, C, 1)
    w2 = wfc[:, 1:2][None, :, :]                     # (1, C, 1)
    t = jnp.sum(y * w1, axis=1, keepdims=True)       # (Bt, 1, 1)
    t = jnp.where(t > 0, t, 0.2 * t)                 # LeakyReLU(0.2)
    z = 1.0 / (1.0 + jnp.exp(-(w2 * t)))             # (Bt, C, 1) sigmoid gate

    # ---- scale the native-dtype block by the per-channel gate ----
    o_ref[...] = (x * z).astype(o_ref.dtype)


def _cores_per_chip():
    """Best-effort TensorCore-per-chip count (v7x has 2, v5e/v6e have 1)."""
    try:
        kind = (getattr(jax.devices()[0], "device_kind", "") or "").lower()
        if "v7" in kind:
            return 2
    except Exception:
        pass
    return 1


def _pick_batch_block(batch, per_elem_bytes, target_bytes, min_steps):
    """Largest divisor of `batch` with <= target_bytes per x slab, preferring
    at least `min_steps` grid steps so every TensorCore double-buffers."""
    cap = max(1, target_bytes // max(int(per_elem_bytes), 1))
    divisors = [d for d in range(1, batch + 1) if batch % d == 0 and d <= cap]
    if not divisors:
        return 1
    keep = [d for d in divisors if batch // d >= min_steps]
    return max(keep) if keep else max(divisors)


def awca_forward(x, w_conv, w_fc1, w_fc2, *, donate_x=False):
    """x: (B, C, H, W); w_conv: (1, C); w_fc1: (1, C); w_fc2: (C, 1)."""
    B, C, H, W = x.shape
    HW = H * W

    x_flat = x.reshape(B, C, HW)                     # no padding, no extra copy

    w_conv2 = jnp.asarray(w_conv, jnp.float32).reshape(1, C)
    wfc = jnp.concatenate(
        [jnp.asarray(w_fc1, jnp.float32).reshape(C, 1),
         jnp.asarray(w_fc2, jnp.float32).reshape(C, 1)], axis=1)   # (C, 2)

    itemsize = jnp.dtype(x.dtype).itemsize
    per_elem_bytes = C * HW * itemsize
    min_steps = 2 * _cores_per_chip()                # >=2 steps per TensorCore
    target_bytes = 3 * (1 << 20) + (1 << 19)         # ~3.5 MiB x slab per step
    Bt = _pick_batch_block(B, per_elem_bytes, target_bytes, min_steps)
    grid_b = B // Bt

    # VMEM budget: double-buffered input + output slabs, f32 temporaries inside
    # the body, plus headroom.  Explicit so v5e's 16 MiB scoped default does not
    # silently force tiny tiles.
    slab_bytes = Bt * per_elem_bytes
    f32_slab = Bt * C * HW * 4
    vmem_needed = 4 * slab_bytes + 2 * f32_slab + (2 << 20)
    vmem_limit = int(min(max(vmem_needed, 16 << 20), 100 << 20))
    # TODO(synk): for very large C*HW where even Bt=1 exceeds v7x's 64 MiB VMEM,
    # fall back to an HW-tiled online-softmax variant with small f32 carries.

    out_flat = pl.pallas_call(
        _awca_kernel,
        out_shape=jax.ShapeDtypeStruct((B, C, HW), x.dtype),
        grid_spec=pltpu.PrefetchScalarGridSpec(
            num_scalar_prefetch=0,
            grid=(grid_b,),
            in_specs=[
                pl.BlockSpec((1, C), lambda b: (0, 0)),            # conv weight (resident)
                pl.BlockSpec((C, 2), lambda b: (0, 0)),            # packed fc1/fc2 (resident)
                pl.BlockSpec((Bt, C, HW), lambda b: (b, 0, 0)),    # x slab (full C,HW extent)
            ],
            out_specs=pl.BlockSpec((Bt, C, HW), lambda b: (b, 0, 0)),
        ),
        compiler_params=pltpu.CompilerParams(
            dimension_semantics=("parallel",),
            vmem_limit_bytes=vmem_limit),
        input_output_aliases={2: 0} if donate_x else {},
    )(w_conv2, wfc, x_flat)

    return out_flat.reshape(B, C, H, W)


def awca_reference(x, w_conv, w_fc1, w_fc2):
    """Pure-JAX reference mirroring the PyTorch forward."""
    B, C, H, W = x.shape
    HW = H * W
    xf = x.reshape(B, C, HW).astype(jnp.float32)
    logits = jnp.einsum('oc,bcs->bos', w_conv, xf)           # (B, 1, HW)
    mask = jax.nn.softmax(logits, axis=2)                    # (B, 1, HW)
    y = jnp.einsum('bcs,bos->bc', xf, mask)                  # (B, C)
    t = y @ w_fc1.T                                          # (B, 1)
    t = jnp.where(t > 0, t, 0.2 * t)
    z = jax.nn.sigmoid(t @ w_fc2.T)                          # (B, C)
    return (xf * z[:, :, None]).reshape(B, C, H, W).astype(x.dtype)


if __name__ == "__main__":
    # Small shapes consistent with the module (channel default = 31).
    B, C, H, W = 2, 31, 16, 16

    key = jax.random.PRNGKey(0)
    kx, k1, k2, k3 = jax.random.split(key, 4)

    x = jax.random.normal(kx, (B, C, H, W), dtype=jnp.float32)

    # Parameter shapes per nn.Module __init__:
    #   conv: Conv2d(C, 1, 1, bias=False) -> weight (1, C, 1, 1) -> (1, C)
    #   fc[0]: Linear(C, 1, bias=False)   -> weight (1, C)
    #   fc[2]: Linear(1, C, bias=False)   -> weight (C, 1)
    w_conv = jax.random.normal(k1, (1, C), dtype=jnp.float32) * 0.1
    w_fc1 = jax.random.normal(k2, (1, C), dtype=jnp.float32) * 0.1
    w_fc2 = jax.random.normal(k3, (C, 1), dtype=jnp.float32) * 0.1

    out = jax.block_until_ready(awca_forward(x, w_conv, w_fc1, w_fc2))
    ref = awca_reference(x, w_conv, w_fc1, w_fc2)

    assert out.shape == (B, C, H, W)
    # Tolerance covers the EUP approximate reciprocal in the softmax denom.
    assert jnp.allclose(out, ref, atol=1e-3, rtol=1e-3), "mismatch vs reference"

    print("KERNEL_OK")
</pallas_src>

<mosaic_0001>
module attributes {stable_mosaic.version = 11 : i64} {
  func.func @_awca_kernel(%arg0: i32, %arg1: memref<1x31xf32, #tpu.memory_space<vmem>>, %arg2: memref<31x2xf32, #tpu.memory_space<vmem>>, %arg3: memref<1x31x256xf32, #tpu.memory_space<vmem>>, %arg4: memref<1x31x256xf32, #tpu.memory_space<vmem>>) attributes {dimension_semantics = [#tpu.dimension_semantics<parallel>], iteration_bounds = array<i64: 2>, scalar_prefetch = 0 : i64, scratch_operands = 0 : i64, tpu.core_type = #tpu.core_type<tc>, window_params = [{pipeline_mode = #tpu.pipeline_mode<synchronous>, transform_indices = @transform_0, window_bounds = array<i64: 1, 31>}, {pipeline_mode = #tpu.pipeline_mode<synchronous>, transform_indices = @transform_1, window_bounds = array<i64: 31, 2>}, {transform_indices = @transform_2, window_bounds = array<i64: 1, 31, 256>}, {transform_indices = @transform_3, window_bounds = array<i64: 1, 31, 256>}]} {
    %c0 = arith.constant 0 : index
    %c0_0 = arith.constant 0 : index
    %c0_1 = arith.constant 0 : index
    %0 = vector.load %arg3[%c0, %c0_0, %c0_1] : memref<1x31x256xf32, #tpu.memory_space<vmem>>, vector<1x31x256xf32>
    %c0_2 = arith.constant 0 : index
    %c0_3 = arith.constant 0 : index
    %1 = vector.load %arg1[%c0_2, %c0_3] : memref<1x31xf32, #tpu.memory_space<vmem>>, vector<1x31xf32>
    %2 = vector.shape_cast %1 : vector<1x31xf32> to vector<1x31x1xf32>
    %3 = vector.broadcast %2 : vector<1x31x1xf32> to vector<1x31x256xf32>
    %4 = arith.mulf %0, %3 : vector<1x31x256xf32>
    %cst = arith.constant dense<0.000000e+00> : vector<1x256xf32>
    %5 = vector.multi_reduction <add>, %4, %cst [1] : vector<1x31x256xf32> to vector<1x256xf32>
    %6 = vector.shape_cast %5 : vector<1x256xf32> to vector<1x1x256xf32>
    %cst_4 = arith.constant dense<0xFF800000> : vector<1x1xf32>
    %7 = vector.multi_reduction <maximumf>, %6, %cst_4 [2] : vector<1x1x256xf32> to vector<1x1xf32>
    %8 = vector.shape_cast %7 : vector<1x1xf32> to vector<1x1x1xf32>
    %9 = vector.broadcast %8 : vector<1x1x1xf32> to vector<1x1x256xf32>
    %10 = arith.subf %6, %9 : vector<1x1x256xf32>
    %11 = math.exp %10 : vector<1x1x256xf32>
    %cst_5 = arith.constant dense<0.000000e+00> : vector<1x1xf32>
    %12 = vector.multi_reduction <add>, %11, %cst_5 [2] : vector<1x1x256xf32> to vector<1x1xf32>
    %13 = vector.shape_cast %12 : vector<1x1xf32> to vector<1x1x1xf32>
    %14 = tpu.reciprocal %13 {approx = true} : vector<1x1x1xf32> -> vector<1x1x1xf32>
    %15 = vector.broadcast %14 : vector<1x1x1xf32> to vector<1x1x256xf32>
    %16 = arith.mulf %11, %15 : vector<1x1x256xf32>
    %17 = vector.broadcast %16 : vector<1x1x256xf32> to vector<1x31x256xf32>
    %18 = arith.mulf %0, %17 : vector<1x31x256xf32>
    %cst_6 = arith.constant dense<0.000000e+00> : vector<1x31xf32>
    %19 = vector.multi_reduction <add>, %18, %cst_6 [2] : vector<1x31x256xf32> to vector<1x31xf32>
    %20 = vector.shape_cast %19 : vector<1x31xf32> to vector<1x31x1xf32>
    %c0_7 = arith.constant 0 : index
    %c0_8 = arith.constant 0 : index
    %21 = vector.load %arg2[%c0_7, %c0_8] : memref<31x2xf32, #tpu.memory_space<vmem>>, vector<31x2xf32>
    %22 = vector.extract_strided_slice %21 {offsets = [0, 0], sizes = [31, 1], strides = [1, 1]} : vector<31x2xf32> to vector<31x1xf32>
    %23 = vector.shape_cast %22 : vector<31x1xf32> to vector<1x31x1xf32>
    %24 = vector.extract_strided_slice %21 {offsets = [0, 1], sizes = [31, 1], strides = [1, 1]} : vector<31x2xf32> to vector<31x1xf32>
    %25 = vector.shape_cast %24 : vector<31x1xf32> to vector<1x31x1xf32>
    %26 = arith.mulf %20, %23 : vector<1x31x1xf32>
    %cst_9 = arith.constant dense<0.000000e+00> : vector<1x1xf32>
    %27 = vector.multi_reduction <add>, %26, %cst_9 [1] : vector<1x31x1xf32> to vector<1x1xf32>
    %28 = vector.shape_cast %27 : vector<1x1xf32> to vector<1x1x1xf32>
    %cst_10 = arith.constant 0.000000e+00 : f32
    %29 = vector.broadcast %cst_10 : f32 to vector<1x1x1xf32>
    %30 = arith.cmpf ogt, %28, %29 : vector<1x1x1xf32>
    %cst_11 = arith.constant 2.000000e-01 : f32
    %31 = vector.broadcast %cst_11 : f32 to vector<1x1x1xf32>
    %32 = arith.mulf %31, %28 : vector<1x1x1xf32>
    %33 = arith.select %30, %28, %32 : vector<1x1x1xi1>, vector<1x1x1xf32>
    %34 = vector.broadcast %33 : vector<1x1x1xf32> to vector<1x31x1xf32>
    %35 = arith.mulf %25, %34 : vector<1x31x1xf32>
    %cst_12 = arith.constant 0.000000e+00 : f32
    %36 = vector.broadcast %cst_12 : f32 to vector<1x31x1xf32>
    %37 = arith.subf %36, %35 : vector<1x31x1xf32>
    %38 = math.exp %37 : vector<1x31x1xf32>
    %cst_13 = arith.constant 1.000000e+00 : f32
    %39 = vector.broadcast %cst_13 : f32 to vector<1x31x1xf32>
    %40 = arith.addf %39, %38 : vector<1x31x1xf32>
    %cst_14 = arith.constant 1.000000e+00 : f32
    %41 = vector.broadcast %cst_14 : f32 to vector<1x31x1xf32>
    %42 = arith.divf %41, %40 : vector<1x31x1xf32>
    %43 = vector.broadcast %42 : vector<1x31x1xf32> to vector<1x31x256xf32>
    %44 = arith.mulf %0, %43 : vector<1x31x256xf32>
    %c0_15 = arith.constant 0 : index
    %c0_16 = arith.constant 0 : index
    %c0_17 = arith.constant 0 : index
    %45 = vector.load %arg4[%c0_15, %c0_16, %c0_17] : memref<1x31x256xf32, #tpu.memory_space<vmem>>, vector<1x31x256xf32>
    tpu.vector_store %arg4[%c0_15, %c0_16, %c0_17], %44 {strides = array<i32>} : memref<1x31x256xf32, #tpu.memory_space<vmem>>, vector<1x31x256xf32>,
    return
  }
  func.func @transform_0(%arg0: i32) -> (i32, i32) {
    %c0_i32 = arith.constant 0 : i32
    %c0_i32_0 = arith.constant 0 : i32
    %c0_i32_1 = arith.constant 0 : i32
    return %c0_i32, %c0_i32_0 : i32, i32
  }
  func.func @transform_1(%arg0: i32) -> (i32, i32) {
    %c0_i32 = arith.constant 0 : i32
    %c0_i32_0 = arith.constant 0 : i32
    %c0_i32_1 = arith.constant 0 : i32
    return %c0_i32, %c0_i32_0 : i32, i32
  }
  func.func @transform_2(%arg0: i32) -> (i32, i32, i32) {
    %c0_i32 = arith.constant 0 : i32
    %c0_i32_0 = arith.constant 0 : i32
    %c0_i32_1 = arith.constant 0 : i32
    return %arg0, %c0_i32, %c0_i32_0 : i32, i32, i32
  }
  func.func @transform_3(%arg0: i32) -> (i32, i32, i32) {
    %c0_i32 = arith.constant 0 : i32
    %c0_i32_0 = arith.constant 0 : i32
    %c0_i32_1 = arith.constant 0 : i32
    return %arg0, %c0_i32, %c0_i32_0 : i32, i32, i32
  }
}

</mosaic_0001>

<llo_original>
// kernel: tpu_custom_call.1
$region0: #{tpu_custom_call.1}
  #allocation0 [shape = 'u32[]', space=smem, size = 0x4, offset = 0x4, fixed_abs, tag = 'smem constant byte address 0x4 - core index']
  #allocation1 [shape = 'u32[144,128]{1,0:T(1,128)}', space=vmem, size = 0x12000, scoped, tag = 'internal scratch']
  %s0 = inlined_call_operand.vmem [shape: f32[1,31], index: 0, kind: input, shape index: {}]
  %s1 = inlined_call_operand.vmem [shape: f32[31,2], index: 1, kind: input, shape index: {}]
  %s2 = inlined_call_operand.vmem [shape: f32[2,31,256], index: 2, kind: input, shape index: {}]
  %s3 = inlined_call_operand.vmem [shape: f32[2,31,256], index: 3, kind: output, shape index: {}]
  %s4 = sld [smem:[#allocation0]]
  $region45: #{tpu_custom_call.1} parent=0
    _
  %s6 = ssub.s32 1, %s4
  %s7 = scalar_select 0, %s6, %s4
  loop: start=0, step=1, limit=4
  $region2: #{tpu_custom_call.1} parent=0 // loop_pre_header
    _
  $region3: #{tpu_custom_call.1} parent=0 // loop_header
    %s9 = sphi 0, %s13
    %p10 = scmp.ge.s32.totalorder %s9, 4
    %s17 = sphi 0, %s17
    %s19 = sphi 0, %s17
    %s20 = sphi 0, %s19
    %s34 = sphi 0, %s20
    %s38 = sphi 0, %s38
    %s40 = sphi 0, %s38
    %s41 = sphi 0, %s40
    %s55 = sphi 0, %s41
    %s61 = sphi 0, %s63
    %s64 = sphi 0, %s61
    %s65 = sphi 0, %s64
    %s81 = sphi 0, %s65
    %s87 = sphi 0, %s89
    %s90 = sphi 0, %s87
    %s91 = sphi 0, %s90
    %s107 = sphi 0, %s91
  $region4: #{tpu_custom_call.1} parent=0 // loop_header_branch
    %12 = sbr.rel (%p10) target = $region8
  $region5: #{tpu_custom_call.1} parent=0 // loop_body
    %s14 = ssub.s32 %s9, 1
    %s15 = ssub.s32 %s9, 2
    %s16 = sadd.s32 %s9, 1
    %s18 = sadd.s32 %s17, 1
    %p21 = scmp.eq.s32.totalorder %s9, 1
    %p22 = scmp.ne.s32.totalorder %s17, %s19
    %p23 = scmp.eq.s32.totalorder %s9, 0
    %p24 = por %p22, %p23
    %p25 = scmp.ne.s32.totalorder %s17, %s19
    %p26 = scmp.eq.s32.totalorder %s14, 1
    %p27 = por %p25, %p26
    %p28 = scmp.ne.s32.totalorder %s19, %s20
    %p29 = scmp.eq.s32.totalorder %s14, 0
    %p30 = por %p28, %p29
    %p31 = scmp.ne.s32.totalorder %s19, %s20
    %p32 = scmp.eq.s32.totalorder %s15, 1
    %p33 = por %p31, %p32
    %p35 = scmp.ne.s32.totalorder %s20, %s34
    %p36 = scmp.eq.s32.totalorder %s15, 0
    %p37 = por %p35, %p36
    %s39 = sadd.s32 %s38, 1
    %p42 = scmp.eq.s32.totalorder %s9, 1
    %p43 = scmp.ne.s32.totalorder %s38, %s40
    %p44 = scmp.eq.s32.totalorder %s9, 0
    %p45 = por %p43, %p44
    %p46 = scmp.ne.s32.totalorder %s38, %s40
    %p47 = scmp.eq.s32.totalorder %s14, 1
    %p48 = por %p46, %p47
    %p49 = scmp.ne.s32.totalorder %s40, %s41
    %p50 = scmp.eq.s32.totalorder %s14, 0
    %p51 = por %p49, %p50
    %p52 = scmp.ne.s32.totalorder %s40, %s41
    %p53 = scmp.eq.s32.totalorder %s15, 1
    %p54 = por %p52, %p53
    %p56 = scmp.ne.s32.totalorder %s41, %s55
    %p57 = scmp.eq.s32.totalorder %s15, 0
    %p58 = por %p56, %p57
    %s59 = ssub.s32 %s9, %s16
    %p60 = scmp.eq.s32.totalorder %s59, 0
    %s62 = sadd.s32 %s61, 1
    %s63 = scalar_select %p60, %s61, %s62
    %p66 = pneg %p60
    %p67 = scmp.eq.s32.totalorder %s9, 1
    %p68 = por %p66, %p67
    %p69 = scmp.ne.s32.totalorder %s61, %s64
    %p70 = scmp.eq.s32.totalorder %s9, 0
    %p71 = por %p69, %p70
    %p72 = scmp.ne.s32.totalorder %s61, %s64
    %p73 = scmp.eq.s32.totalorder %s14, 1
    %p74 = por %p72, %p73
    %p75 = scmp.ne.s32.totalorder %s64, %s65
    %p76 = scmp.eq.s32.totalorder %s14, 0
    %p77 = por %p75, %p76
    %p78 = scmp.ne.s32.totalorder %s64, %s65
    %p79 = scmp.eq.s32.totalorder %s15, 1
    %p80 = por %p78, %p79
    %p82 = scmp.ne.s32.totalorder %s65, %s81
    %p83 = scmp.eq.s32.totalorder %s15, 0
    %p84 = por %p82, %p83
    %s85 = ssub.s32 %s9, %s16
    %p86 = scmp.eq.s32.totalorder %s85, 0
    %s88 = sadd.s32 %s87, 1
    %s89 = scalar_select %p86, %s87, %s88
    %p92 = pneg %p86
    %p93 = scmp.eq.s32.totalorder %s9, 1
    %p94 = por %p92, %p93
    %p95 = scmp.ne.s32.totalorder %s87, %s90
    %p96 = scmp.eq.s32.totalorder %s9, 0
    %p97 = por %p95, %p96
    %p98 = scmp.ne.s32.totalorder %s87, %s90
    %p99 = scmp.eq.s32.totalorder %s14, 1
    %p100 = por %p98, %p99
    %p101 = scmp.ne.s32.totalorder %s90, %s91
    %p102 = scmp.eq.s32.totalorder %s14, 0
    %p103 = por %p101, %p102
    %p104 = scmp.ne.s32.totalorder %s90, %s91
    %p105 = scmp.eq.s32.totalorder %s15, 1
    %p106 = por %p104, %p105
    %p108 = scmp.ne.s32.totalorder %s91, %s107
    %p109 = scmp.eq.s32.totalorder %s15, 0
    %p110 = por %p108, %p109
    %p111 = scmp.le.s32.totalorder 1, %s9
    %p112 = scmp.lt.s32.totalorder %s9, 3
    %p113 = pnand %p111, %p112
    %p114 = pneg %p113
    // Predicated region
    $region9: #{tpu_custom_call.1} parent=5 // pred_check
      _
    $region10: #{tpu_custom_call.1} parent=5 // pred_check_branch
      %116 = sbr.rel (%p113) target = $region12
    $region11: #{tpu_custom_call.1} parent=5 // pred_region
      %s117 = ssub.s32 %s9, 1
      // Predicated region
      $region13: #{tpu_custom_call.1} parent=11 // pred_check
        %p118 = pneg %p30
      $region14: #{tpu_custom_call.1} parent=11 // pred_check_branch
        %120 = sbr.rel (%p118) target = $region16
      $region15: #{tpu_custom_call.1} parent=11 // pred_region
        _
      $region16: #{tpu_custom_call.1} parent=11 // pred_fallthru
        _
      // Predicated region
      $region17: #{tpu_custom_call.1} parent=11 // pred_check
        %p121 = pneg %p51
      $region18: #{tpu_custom_call.1} parent=11 // pred_check_branch
        %123 = sbr.rel (%p121) target = $region20
      $region19: #{tpu_custom_call.1} parent=11 // pred_region
        _
      $region20: #{tpu_custom_call.1} parent=11 // pred_fallthru
        _
    $region12: #{tpu_custom_call.1} parent=5 // pred_fallthru
      _
    %p124 = scmp.lt.s32.totalorder %s9, 2
    // Predicated region
    $region21: #{tpu_custom_call.1} parent=5 // pred_check
      %p125 = pneg %p124
    $region22: #{tpu_custom_call.1} parent=5 // pred_check_branch
      %127 = sbr.rel (%p125) target = $region24
    $region23: #{tpu_custom_call.1} parent=5 // pred_region
      // Predicated region
      $region25: #{tpu_custom_call.1} parent=23 // pred_check
        %p128 = pneg %p71
      $region26: #{tpu_custom_call.1} parent=23 // pred_check_branch
        %130 = sbr.rel (%p128) target = $region28
      $region27: #{tpu_custom_call.1} parent=23 // pred_region
        %p131 = scmp.lt.s32.totalorder %s9, 1
        %s132 = scalar_select %p131, %s9, 1
        %s133 = smul.addr %s132, 8
        %s134 = smul.addr %s133, 8
        %s135 = scalar_lea.vmem %s2, %s134
      $region28: #{tpu_custom_call.1} parent=23 // pred_fallthru
        _
    $region24: #{tpu_custom_call.1} parent=5 // pred_fallthru
      _
    %p136 = scmp.le.s32.totalorder 1, %s9
    %p137 = scmp.lt.s32.totalorder %s9, 3
    %p138 = pnand %p136, %p137
    %p139 = pneg %p138
    // Predicated region
    $region29: #{tpu_custom_call.1} parent=5 // pred_check
      _
    $region30: #{tpu_custom_call.1} parent=5 // pred_check_branch
      %141 = sbr.rel (%p138) target = $region32
    $region31: #{tpu_custom_call.1} parent=5 // pred_region
      %s142 = ssub.s32 %s9, 1
      %p143 = pneg %p30
      %p144 = pneg %p27
      %p145 = pneg %p51
      %p146 = pneg %p48
      %p147 = scmp.lt.s32.totalorder %s14, 1
      %s148 = scalar_select %p147, %s14, 1
      %s149 = smul.addr %s148, 8
      %s150 = smul.addr %s149, 8
      %s151 = scalar_lea.vmem %s2, %s150
      %p152 = pneg %p77
      %p153 = pneg %p74
      %p154 = pneg %p103
      %p155 = pneg %p100
      %p156 = scmp.lt.s32.totalorder %s14, 1
      %s157 = scalar_select %p156, %s14, 1
      %s158 = smul.addr %s157, 8
      %s159 = smul.addr %s158, 8
      %s160 = scalar_lea.vmem %s3, %s159
      %p161 = scmp.lt.s32.totalorder %s14, 1
      %s162 = scalar_select %p161, %s14, 1
      %s163 = smul.addr %s162, 8
      %s164 = smul.addr %s163, 8
      %s165 = scalar_lea.vmem %s2, %s164
      %p166 = scmp.lt.s32.totalorder %s14, 1
      %s167 = scalar_select %p166, %s14, 1
      %s168 = smul.addr %s167, 8
      %s169 = smul.addr %s168, 8
      %s170 = scalar_lea.vmem %s3, %s169
      %v171 = vld [vmem:[%s165] sm:$0xff]
      %v172 = vld [vmem:[%s165 + $0x8] sm:$0xff]
      %v173 = vld [vmem:[%s165 + $0x10] sm:$0xff]
      %v174 = vld [vmem:[%s165 + $0x18] sm:$0xff]
      %v175 = vld [vmem:[%s165 + $0x20] sm:$0xff]
      %v176 = vld [vmem:[%s165 + $0x28] sm:$0xff]
      %v177 = vld [vmem:[%s165 + $0x30] sm:$0x7f]
      %v178 = vld [vmem:[%s165 + $0x38] sm:$0x7f]
      %v179 = vld [vmem:[%s0] sm:$0x1]
      %v180 = vlaneseq
      %v181 = vshrl.u32 %v180, 7
      %v182 = vsub.s32 0, %v181
      %v183 = vrot.slane %v179, %v182
      %185 = vbcast.lane.b32.xlu0 %v183, 256
      %v186 = vpop.permute.xlu0 %185
      %s188 = sor.u32 256, 8
      %189 = vbcast.lane.b32.xlu0 %v183, %s188
      %v190 = vpop.permute.xlu0 %189
      %s192 = sor.u32 256, 16
      %193 = vbcast.lane.b32.xlu0 %v183, %s192
      %v194 = vpop.permute.xlu0 %193
      %s196 = sor.u32 256, 24
      %197 = vbcast.lane.b32.xlu0 %v183, %s196
      %v198 = vpop.permute.xlu0 %197
      %v199 = vmul.f32 %v171, %v186
      %v200 = vmul.f32 %v172, %v186
      %v201 = vmul.f32 %v173, %v190
      %v202 = vmul.f32 %v174, %v190
      %v203 = vmul.f32 %v175, %v194
      %v204 = vmul.f32 %v176, %v194
      %v205 = vmul.f32 %v177, %v198
      %v206 = vmul.f32 %v178, %v198
      %v207 = vadd.f32 %v199, %v201
      %v208 = vadd.f32 %v207, %v203
      %vm209 = vcmask 1046528
      %v210 = vsel %vm209, %v205, 0.0
      %v211 = vadd.f32 %v208, %v210
      %v212 = vrot.slane %v211, 4
      %v213 = vadd.f32 %v211, %v212
      %v214 = vrot.slane %v213, 2
      %v215 = vadd.f32 %v213, %v214
      %v216 = vrot.slane %v215, 1
      %v217 = vadd.f32 %v215, %v216
      %v218 = vadd.f32 %v200, %v202
      %v219 = vadd.f32 %v218, %v204
      %v220 = vsel %vm209, %v206, 0.0
      %v221 = vadd.f32 %v219, %v220
      %v222 = vrot.slane %v221, 4
      %v223 = vadd.f32 %v221, %v222
      %v224 = vrot.slane %v223, 2
      %v225 = vadd.f32 %v223, %v224
      %v226 = vrot.slane %v225, 1
      %v227 = vadd.f32 %v225, %v226
      %v228 = vmax.f32 %v217, %v227
      %229 = vmax.xlane.f32.xlu0 %v228
      %v230 = vpop.xlane.xlu0 %229
      %v231 = vsub.f32 %v217, %v230
      %v232 = vsub.f32 %v227, %v230
      %v233 = vmul.f32 %v231, 1.442695
      %v234 = vpow.pop %v233
      %v235 = vmul.f32 %v232, 1.442695
      %v236 = vpow.pop %v235
      %v237 = vadd.f32 %v234, %v236
      %238 = vadd.xlane.f32.xlu0 %v237
      %v239 = vpop.xlane.xlu0 %238
      %v240 = vrcp.pop %v239
      %v241 = vmul.f32 %v234, %v240
      %v242 = vmul.f32 %v236, %v240
      %v243 = vmul.f32 %v171, %v241
      %v244 = vmul.f32 %v172, %v242
      %v245 = vmul.f32 %v173, %v241
      %v246 = vmul.f32 %v174, %v242
      %v247 = vmul.f32 %v175, %v241
      %v248 = vmul.f32 %v176, %v242
      %v249 = vmul.f32 %v177, %v241
      %v250 = vmul.f32 %v178, %v242
      %v251 = vadd.f32 %v243, %v244
      %252 = vadd.xlane.f32.xlu0 %v251
      %v253 = vpop.xlane.xlu0 %252
      %v254 = vadd.f32 %v245, %v246
      %255 = vadd.xlane.f32.xlu0 %v254
      %v256 = vpop.xlane.xlu0 %255
      %v257 = vadd.f32 %v247, %v248
      %258 = vadd.xlane.f32.xlu0 %v257
      %v259 = vpop.xlane.xlu0 %258
      %v260 = vsel %vm209, %v249, 0.0
      %v261 = vsel %vm209, %v250, 0.0
      %v262 = vadd.f32 %v260, %v261
      %263 = vadd.xlane.f32.xlu0 %v262
      %v264 = vpop.xlane.xlu0 %263
      %v265 = vld [vmem:[%s1] sm:$0xff]
      %v266 = vld [vmem:[%s1 + $0x8] sm:$0xff]
      %v267 = vld [vmem:[%s1 + $0x10] sm:$0xff]
      %v268 = vld [vmem:[%s1 + $0x18] sm:$0x7f]
      %v269 = vmul.f32 %v253, %v265
      %v270 = vmul.f32 %v256, %v266
      %v271 = vmul.f32 %v259, %v267
      %v272 = vmul.f32 %v264, %v268
      %vm273 = vcmask 7168
      %v274 = vsel %vm273, %v269, 0.0
      %v275 = vsel %vm273, %v270, 0.0
      %v276 = vadd.f32 %v274, %v275
      %v277 = vsel %vm273, %v271, 0.0
      %v278 = vadd.f32 %v276, %v277
      %vm279 = vcmask 6144
      %v280 = vsel %vm279, %v272, 0.0
      %v281 = vadd.f32 %v278, %v280
      %v282 = vrot.slane %v281, 4
      %v283 = vadd.f32 %v281, %v282
      %v284 = vrot.slane %v283, 2
      %v285 = vadd.f32 %v283, %v284
      %v286 = vrot.slane %v285, 1
      %v287 = vadd.f32 %v285, %v286
      %vm288 = vcmp.gt.f32.partialorder %v287, 0.0
      %v289 = vmul.f32 %v287, 0.2
      %v290 = vsel %vm288, %v287, %v289
      %292 = vrot.lane.b32.xlu0 %v290, 1
      %v293 = vpop.permute.xlu0 %292
      %v295 = vmul.f32 %v265, %v293
      %v296 = vmul.f32 %v266, %v293
      %v297 = vmul.f32 %v267, %v293
      %v298 = vmul.f32 %v268, %v293
      %v299 = vsub.f32 0.0, %v295
      %v300 = vsub.f32 0.0, %v296
      %v301 = vsub.f32 0.0, %v297
      %v302 = vsub.f32 0.0, %v298
      %v303 = vmul.f32 %v299, 1.442695
      %v304 = vpow.pop %v303
      %v305 = vmul.f32 %v300, 1.442695
      %v306 = vpow.pop %v305
      %v307 = vmul.f32 %v301, 1.442695
      %v308 = vpow.pop %v307
      %v309 = vmul.f32 %v302, 1.442695
      %v310 = vpow.pop %v309
      %v311 = vadd.f32 %v304, 1.0
      %v312 = vadd.f32 %v306, 1.0
      %v313 = vadd.f32 %v308, 1.0
      %v314 = vadd.f32 %v310, 1.0
      %v315 = vrcp.pop %v311
      %v316 = vmul.f32 1.0, %v315
      %v317 = vrcp.pop %v312
      %v318 = vmul.f32 1.0, %v317
      %v319 = vrcp.pop %v313
      %v320 = vmul.f32 1.0, %v319
      %v321 = vrcp.pop %v314
      %v322 = vmul.f32 1.0, %v321
      %324 = vset.pattern.permute.xlu0 1
      %325 = vperm.xlu0 %324, %v316
      %v326 = vpop.permute.xlu0 %325
      %329 = vset.pattern.permute.xlu0 1
      %330 = vperm.xlu0 %329, %v318
      %v331 = vpop.permute.xlu0 %330
      %334 = vset.pattern.permute.xlu0 1
      %335 = vperm.xlu0 %334, %v320
      %v336 = vpop.permute.xlu0 %335
      %339 = vset.pattern.permute.xlu0 1
      %340 = vperm.xlu0 %339, %v322
      %v341 = vpop.permute.xlu0 %340
      %v343 = vmul.f32 %v171, %v326
      %v344 = vmul.f32 %v172, %v326
      %v345 = vmul.f32 %v173, %v331
      %v346 = vmul.f32 %v174, %v331
      %v347 = vmul.f32 %v175, %v336
      %v348 = vmul.f32 %v176, %v336
      %v349 = vmul.f32 %v177, %v341
      %v350 = vmul.f32 %v178, %v341
      %351 = vst [vmem:[%s170] sm:$0xff] %v343
      %352 = vst [vmem:[%s170 + $0x8] sm:$0xff] %v344
      %353 = vst [vmem:[%s170 + $0x10] sm:$0xff] %v345
      %354 = vst [vmem:[%s170 + $0x18] sm:$0xff] %v346
      %355 = vst [vmem:[%s170 + $0x20] sm:$0xff] %v347
      %356 = vst [vmem:[%s170 + $0x28] sm:$0xff] %v348
      %357 = vst [vmem:[%s170 + $0x30] sm:$0x7f] %v349
      %358 = vst [vmem:[%s170 + $0x38] sm:$0x7f] %v350
      %p359 = scmp.lt.s32.totalorder %s14, 1
      %s360 = scalar_select %p359, %s14, 1
      %s361 = smul.addr %s360, 8
      %s362 = smul.addr %s361, 8
      %s363 = scalar_lea.vmem %s3, %s362
      // Predicated region
      $region33: #{tpu_custom_call.1} parent=31 // pred_check
        %p364 = pneg %p100
      $region34: #{tpu_custom_call.1} parent=31 // pred_check_branch
        %366 = sbr.rel (%p364) target = $region36
      $region35: #{tpu_custom_call.1} parent=31 // pred_region
        _
      $region36: #{tpu_custom_call.1} parent=31 // pred_fallthru
        _
    $region32: #{tpu_custom_call.1} parent=5 // pred_fallthru
      _
    %p367 = scmp.le.s32.totalorder 2, %s9
    // Predicated region
    $region37: #{tpu_custom_call.1} parent=5 // pred_check
      %p368 = pneg %p367
    $region38: #{tpu_custom_call.1} parent=5 // pred_check_branch
      %370 = sbr.rel (%p368) target = $region40
    $region39: #{tpu_custom_call.1} parent=5 // pred_region
      %s371 = ssub.s32 %s9, 2
      // Predicated region
      $region41: #{tpu_custom_call.1} parent=39 // pred_check
        %p372 = pneg %p106
      $region42: #{tpu_custom_call.1} parent=39 // pred_check_branch
        %374 = sbr.rel (%p372) target = $region44
      $region43: #{tpu_custom_call.1} parent=39 // pred_region
        %p375 = scmp.lt.s32.totalorder %s15, 1
        %s376 = scalar_select %p375, %s15, 1
        %s377 = smul.addr %s376, 8
        %s378 = smul.addr %s377, 8
        %s379 = scalar_lea.vmem %s3, %s378
      $region44: #{tpu_custom_call.1} parent=39 // pred_fallthru
        _
    $region40: #{tpu_custom_call.1} parent=5 // pred_fallthru
      _
  $region6: #{tpu_custom_call.1} parent=0 // loop_footer
    %s13 = sadd.s32 1, %s9
  $region7: #{tpu_custom_call.1} parent=0 // loop_footer_branch
    %8 = sbr.rel target = $region3
  $region8: #{tpu_custom_call.1} parent=0 // loop_exit
    _

</llo_original>
